<compile_context>
chip_gen: v6e
topology: v6e:2x2x1
jax: 0.10.0
libtpu: 0.0.40
codegen_flags: <defaults>
</compile_context>

<pallas_src>
import functools

import jax
import jax.numpy as jnp
from jax.experimental import pallas as pl
from jax.experimental.pallas import tpu as pltpu

_LANE = 128
_SUBLANE = 8
_TILE = _SUBLANE * _LANE  # 1024 elements = one (8,128) f32 tile


def _mse_sum_kernel(pred_ref, real_ref, out_ref, acc_ref, *,
                    rows, block_rows, steps_per_core, num_acc):
    p = pl.program_id(0)                 # "parallel" axis (TensorCore shard)
    s = pl.program_id(1)                 # "arbitrary" reduction axis
    nsteps = pl.num_programs(1)
    block_idx = p * steps_per_core + s   # logical (unclamped) block index

    # Init this core's accumulator at the start of its reduction sweep.
    @pl.when(s == 0)
    def _():
        acc_ref[...] = jnp.zeros_like(acc_ref)

    # Cast to f32 in-kernel; inputs arrive in their native dtype.
    d = real_ref[...].astype(jnp.float32) - pred_ref[...].astype(jnp.float32)
    dd = d * d

    full_blocks = rows // block_rows     # python int: blocks with no ragged rows

    # Fast path: block is fully in-bounds -> plain VPU accumulate into
    # num_acc independent (8,128) partials (breaks the vadd dependency chain).
    @pl.when(block_idx < full_blocks)
    def _():
        acc_ref[...] = acc_ref[...] + dd.reshape(-1, num_acc, _SUBLANE, _LANE).sum(axis=0)

    # Ragged / overhanging block: only the first `valid_rows` rows are real
    # (may be <= 0 for fully out-of-range blocks whose DMA index was clamped).
    # Row-only mask: one (block_rows,1) int32 iota, no lane index math.
    @pl.when(block_idx >= full_blocks)
    def _():
        valid_rows = rows - block_idx * block_rows
        row = jax.lax.broadcasted_iota(jnp.int32, (block_rows, 1), 0)
        masked = jnp.where(row < valid_rows, dd, jnp.float32(0.0))
        acc_ref[...] = acc_ref[...] + masked.reshape(-1, num_acc, _SUBLANE, _LANE).sum(axis=0)

    # Finalize: fold the num_acc partials into this core's (8,128) output
    # block. No cross-lane reduction in-kernel; the wrapper sums the partials.
    @pl.when(s == nsteps - 1)
    def _():
        out_ref[...] = acc_ref[...].sum(axis=0)


def _num_tensorcores():
    """2 on v7x-class chips (2 TCs/chip), else 1. Best-effort detection."""
    try:
        kind = jax.devices()[0].device_kind.lower()
    except Exception:
        return 1
    return 2 if ("v7" in kind or "7x" in kind) else 1


def mse_pallas(pred, real, *, block_rows=None, num_partials=None):
    assert pred.shape == real.shape, "pred/real must have identical shapes"
    n = int(pred.size)  # original numel -> divisor
    if n == 0:
        return jnp.float32(jnp.nan)  # matches torch's 0/0

    flat_p = pred.reshape(-1)
    flat_r = real.reshape(-1)

    # Stream only the 1024-aligned prefix through the kernel; add the ragged
    # tail (< 1024 elements) with a tiny jnp expression. This avoids the old
    # full-array jnp.pad copy for misaligned sizes.
    n_main = (n // _TILE) * _TILE
    tail_sum = jnp.float32(0.0)
    if n_main == 0:
        # Tiny input (< 1024 elements): zero-pad up to one tile (negligible).
        pad = _TILE - n
        main_p = jnp.pad(flat_p, (0, pad)).reshape(-1, _LANE)
        main_r = jnp.pad(flat_r, (0, pad)).reshape(-1, _LANE)
    else:
        main_p = flat_p[:n_main].reshape(-1, _LANE)
        main_r = flat_r[:n_main].reshape(-1, _LANE)
        if n > n_main:
            tp = flat_p[n_main:].astype(jnp.float32)
            tr = flat_r[n_main:].astype(jnp.float32)
            tail_sum = jnp.sum((tr - tp) ** 2)

    rows = main_p.shape[0]  # multiple of 8

    # Tile sizing: 4096 rows (2 MiB/input tile) for 4-byte dtypes, 8192 rows
    # for <=2-byte dtypes; clamped to the slab and to a multiple of 8.
    itemsize = max(jnp.dtype(pred.dtype).itemsize, jnp.dtype(real.dtype).itemsize)
    if block_rows is None:
        block_rows = 8192 if itemsize <= 2 else 4096
    block_rows = max(_SUBLANE, (int(block_rows) // _SUBLANE) * _SUBLANE)
    block_rows = min(block_rows, rows)

    sub_blocks = block_rows // _SUBLANE
    num_acc = 4 if sub_blocks % 4 == 0 else (2 if sub_blocks % 2 == 0 else 1)

    total_blocks = pl.cdiv(rows, block_rows)
    if num_partials is None:
        num_partials = _num_tensorcores()
    num_partials = max(1, min(int(num_partials), total_blocks))
    steps_per_core = pl.cdiv(total_blocks, num_partials)

    def in_map(p, s):
        # Clamp the DMA block index so split-induced overhang blocks stay
        # in-bounds; their (duplicate) data is zero-masked in the kernel.
        return (jnp.minimum(p * steps_per_core + s, total_blocks - 1), 0)

    # Explicit VMEM budget: double-buffered inputs + generous f32 temporaries,
    # floored at 32 MiB and capped at 48 MiB (safe under v7x's 64 MiB physical).
    in_tile_bytes = block_rows * _LANE * itemsize
    vmem_limit = 2 * 2 * in_tile_bytes + 6 * block_rows * _LANE * 4 + (4 << 20)
    vmem_limit = int(min(max(vmem_limit, 32 << 20), 48 << 20))

    partials = pl.pallas_call(
        functools.partial(_mse_sum_kernel, rows=rows, block_rows=block_rows,
                          steps_per_core=steps_per_core, num_acc=num_acc),
        out_shape=jax.ShapeDtypeStruct((num_partials * _SUBLANE, _LANE), jnp.float32),
        grid_spec=pltpu.PrefetchScalarGridSpec(
            num_scalar_prefetch=0,
            grid=(num_partials, steps_per_core),
            in_specs=[
                pl.BlockSpec((block_rows, _LANE), in_map),
                pl.BlockSpec((block_rows, _LANE), in_map),
            ],
            out_specs=pl.BlockSpec((_SUBLANE, _LANE), lambda p, s: (p, 0)),
            scratch_shapes=[pltpu.VMEM((num_acc, _SUBLANE, _LANE), jnp.float32)],
        ),
        compiler_params=pltpu.CompilerParams(
            dimension_semantics=("parallel", "arbitrary"),
            vmem_limit_bytes=vmem_limit,
        ),
    )(main_p, main_r)

    return (jnp.sum(partials) + tail_sum) / jnp.float32(n)


def _ref_mse(pred, real):
    d = real.astype(jnp.float32) - pred.astype(jnp.float32)
    return jnp.sum(d * d) / pred.size


if __name__ == "__main__":
    key = jax.random.PRNGKey(0)
    k1, k2, k3, k4, k5, k6 = jax.random.split(key, 6)

    # 1) Main check: small NCHW-ish tensors (typical usage of this loss).
    shape = (2, 4, 16, 16)
    pred = jax.random.normal(k1, shape, dtype=jnp.float32)
    real = jax.random.normal(k2, shape, dtype=jnp.float32)
    out = mse_pallas(pred, real)
    jax.block_until_ready(out)
    assert jnp.allclose(out, _ref_mse(pred, real), rtol=1e-5, atol=1e-6), (
        out, _ref_mse(pred, real))

    # 2) Ragged last block + forced 2-way partials (exercises the v7x-style
    #    sharded path, the clamped index_map and the row-only mask).
    shape2 = (5, 1024)
    pred2 = jax.random.normal(k3, shape2, dtype=jnp.float32)
    real2 = jax.random.normal(k4, shape2, dtype=jnp.float32)
    out2 = mse_pallas(pred2, real2, block_rows=16, num_partials=2)
    jax.block_until_ready(out2)
    assert jnp.allclose(out2, _ref_mse(pred2, real2), rtol=1e-5, atol=1e-6), (
        out2, _ref_mse(pred2, real2))

    # 3) Misaligned numel (3000): aligned prefix through the kernel, <1024
    #    element tail handled in the wrapper (no full-array pad copy).
    shape3 = (3, 1000)
    pred3 = jax.random.normal(k5, shape3, dtype=jnp.float32)
    real3 = jax.random.normal(k6, shape3, dtype=jnp.float32)
    out3 = mse_pallas(pred3, real3)
    jax.block_until_ready(out3)
    assert jnp.allclose(out3, _ref_mse(pred3, real3), rtol=1e-5, atol=1e-6), (
        out3, _ref_mse(pred3, real3))

    # 4) bf16 inputs: native-dtype loads, in-kernel f32 cast.
    pred4 = pred.astype(jnp.bfloat16)
    real4 = real.astype(jnp.bfloat16)
    out4 = mse_pallas(pred4, real4)
    jax.block_until_ready(out4)
    assert jnp.allclose(out4, _ref_mse(pred4, real4), rtol=1e-4, atol=1e-6), (
        out4, _ref_mse(pred4, real4))

    print("KERNEL_OK")
</pallas_src>

<mosaic_0001>
module attributes {stable_mosaic.version = 11 : i64} {
  func.func @_mse_sum_kernel(%arg0: i32, %arg1: i32, %arg2: memref<16x128xf32, #tpu.memory_space<vmem>>, %arg3: memref<16x128xf32, #tpu.memory_space<vmem>>, %arg4: memref<8x128xf32, #tpu.memory_space<vmem>>, %arg5: memref<2x8x128xf32, #tpu.memory_space<vmem>>) attributes {dimension_semantics = [#tpu.dimension_semantics<parallel>, #tpu.dimension_semantics<arbitrary>], iteration_bounds = array<i64: 1, 1>, scalar_prefetch = 0 : i64, scratch_operands = 1 : i64, tpu.core_type = #tpu.core_type<tc>, window_params = [{transform_indices = @transform_0, window_bounds = array<i64: 16, 128>}, {transform_indices = @transform_1, window_bounds = array<i64: 16, 128>}, {transform_indices = @transform_2, window_bounds = array<i64: 8, 128>}]} {
    %c1_i32 = arith.constant 1 : i32
    %0 = arith.muli %arg0, %c1_i32 : i32
    %1 = arith.addi %0, %arg1 : i32
    %c0_i32 = arith.constant 0 : i32
    %2 = arith.cmpi eq, %arg1, %c0_i32 : i32
    %3 = arith.extui %2 : i1 to i32
    %c0_i32_0 = arith.constant 0 : i32
    %4 = arith.cmpi ne, %3, %c0_i32_0 : i32
    scf.if %4 {
      %cst = arith.constant 0.000000e+00 : f32
      %18 = vector.broadcast %cst : f32 to vector<2x8x128xf32>
      %c0_10 = arith.constant 0 : index
      %c0_11 = arith.constant 0 : index
      %c0_12 = arith.constant 0 : index
      %19 = vector.load %arg5[%c0_10, %c0_11, %c0_12] : memref<2x8x128xf32, #tpu.memory_space<vmem>>, vector<2x8x128xf32>
      tpu.vector_store %arg5[%c0_10, %c0_11, %c0_12], %18 {strides = array<i32>} : memref<2x8x128xf32, #tpu.memory_space<vmem>>, vector<2x8x128xf32>,
    } else {
    }
    %c0 = arith.constant 0 : index
    %c0_1 = arith.constant 0 : index
    %5 = vector.load %arg3[%c0, %c0_1] : memref<16x128xf32, #tpu.memory_space<vmem>>, vector<16x128xf32>
    %c0_2 = arith.constant 0 : index
    %c0_3 = arith.constant 0 : index
    %6 = vector.load %arg2[%c0_2, %c0_3] : memref<16x128xf32, #tpu.memory_space<vmem>>, vector<16x128xf32>
    %7 = arith.subf %5, %6 : vector<16x128xf32>
    %8 = arith.mulf %7, %7 : vector<16x128xf32>
    %c1_i32_4 = arith.constant 1 : i32
    %9 = arith.cmpi slt, %1, %c1_i32_4 : i32
    %10 = arith.extui %9 : i1 to i32
    %c0_i32_5 = arith.constant 0 : i32
    %11 = arith.cmpi ne, %10, %c0_i32_5 : i32
    scf.if %11 {
      %c0_10 = arith.constant 0 : index
      %c0_11 = arith.constant 0 : index
      %c0_12 = arith.constant 0 : index
      %18 = vector.load %arg5[%c0_10, %c0_11, %c0_12] : memref<2x8x128xf32, #tpu.memory_space<vmem>>, vector<2x8x128xf32>
      %19 = vector.shape_cast %8 : vector<16x128xf32> to vector<1x2x8x128xf32>
      %cst = arith.constant dense<0.000000e+00> : vector<2x8x128xf32>
      %20 = vector.multi_reduction <add>, %19, %cst [0] : vector<1x2x8x128xf32> to vector<2x8x128xf32>
      %21 = arith.addf %18, %20 : vector<2x8x128xf32>
      %c0_13 = arith.constant 0 : index
      %c0_14 = arith.constant 0 : index
      %c0_15 = arith.constant 0 : index
      %22 = vector.load %arg5[%c0_13, %c0_14, %c0_15] : memref<2x8x128xf32, #tpu.memory_space<vmem>>, vector<2x8x128xf32>
      tpu.vector_store %arg5[%c0_13, %c0_14, %c0_15], %21 {strides = array<i32>} : memref<2x8x128xf32, #tpu.memory_space<vmem>>, vector<2x8x128xf32>,
    } else {
    }
    %c1_i32_6 = arith.constant 1 : i32
    %12 = arith.cmpi sge, %1, %c1_i32_6 : i32
    %13 = arith.extui %12 : i1 to i32
    %c0_i32_7 = arith.constant 0 : i32
    %14 = arith.cmpi ne, %13, %c0_i32_7 : i32
    scf.if %14 {
      %c16_i32 = arith.constant 16 : i32
      %18 = arith.muli %1, %c16_i32 : i32
      %c16_i32_10 = arith.constant 16 : i32
      %19 = arith.subi %c16_i32_10, %18 : i32
      %20 = tpu.iota {dimensions = array<i32: 0>} : vector<16x1xi32>
      %21 = vector.broadcast %19 : i32 to vector<16x1xi32>
      %22 = arith.cmpi slt, %20, %21 : vector<16x1xi32>
      %cst = arith.constant 0.000000e+00 : f32
      %23 = vector.shape_cast %22 : vector<16x1xi1> to vector<16x1xi1>
      %24 = vector.broadcast %23 : vector<16x1xi1> to vector<16x128xi1>
      %25 = vector.broadcast %cst : f32 to vector<16x128xf32>
      %26 = arith.select %24, %8, %25 : vector<16x128xi1>, vector<16x128xf32>
      %c0_11 = arith.constant 0 : index
      %c0_12 = arith.constant 0 : index
      %c0_13 = arith.constant 0 : index
      %27 = vector.load %arg5[%c0_11, %c0_12, %c0_13] : memref<2x8x128xf32, #tpu.memory_space<vmem>>, vector<2x8x128xf32>
      %28 = vector.shape_cast %26 : vector<16x128xf32> to vector<1x2x8x128xf32>
      %cst_14 = arith.constant dense<0.000000e+00> : vector<2x8x128xf32>
      %29 = vector.multi_reduction <add>, %28, %cst_14 [0] : vector<1x2x8x128xf32> to vector<2x8x128xf32>
      %30 = arith.addf %27, %29 : vector<2x8x128xf32>
      %c0_15 = arith.constant 0 : index
      %c0_16 = arith.constant 0 : index
      %c0_17 = arith.constant 0 : index
      %31 = vector.load %arg5[%c0_15, %c0_16, %c0_17] : memref<2x8x128xf32, #tpu.memory_space<vmem>>, vector<2x8x128xf32>
      tpu.vector_store %arg5[%c0_15, %c0_16, %c0_17], %30 {strides = array<i32>} : memref<2x8x128xf32, #tpu.memory_space<vmem>>, vector<2x8x128xf32>,
    } else {
    }
    %c0_i32_8 = arith.constant 0 : i32
    %15 = arith.cmpi eq, %arg1, %c0_i32_8 : i32
    %16 = arith.extui %15 : i1 to i32
    %c0_i32_9 = arith.constant 0 : i32
    %17 = arith.cmpi ne, %16, %c0_i32_9 : i32
    scf.if %17 {
      %c0_10 = arith.constant 0 : index
      %c0_11 = arith.constant 0 : index
      %c0_12 = arith.constant 0 : index
      %18 = vector.load %arg5[%c0_10, %c0_11, %c0_12] : memref<2x8x128xf32, #tpu.memory_space<vmem>>, vector<2x8x128xf32>
      %cst = arith.constant dense<0.000000e+00> : vector<8x128xf32>
      %19 = vector.multi_reduction <add>, %18, %cst [0] : vector<2x8x128xf32> to vector<8x128xf32>
      %c0_13 = arith.constant 0 : index
      %c0_14 = arith.constant 0 : index
      %20 = vector.load %arg4[%c0_13, %c0_14] : memref<8x128xf32, #tpu.memory_space<vmem>>, vector<8x128xf32>
      tpu.vector_store %arg4[%c0_13, %c0_14], %19 {strides = array<i32>} : memref<8x128xf32, #tpu.memory_space<vmem>>, vector<8x128xf32>,
    } else {
    }
    return
  }
  func.func @transform_0(%arg0: i32, %arg1: i32) -> (i32, i32) {
    %c1_i32 = arith.constant 1 : i32
    %0 = arith.muli %arg0, %c1_i32 : i32
    %1 = arith.addi %0, %arg1 : i32
    %c0_i32 = arith.constant 0 : i32
    %2 = arith.minsi %1, %c0_i32 : i32
    %c0_i32_0 = arith.constant 0 : i32
    %c0_i32_1 = arith.constant 0 : i32
    return %2, %c0_i32_0 : i32, i32
  }
  func.func @transform_1(%arg0: i32, %arg1: i32) -> (i32, i32) {
    %c1_i32 = arith.constant 1 : i32
    %0 = arith.muli %arg0, %c1_i32 : i32
    %1 = arith.addi %0, %arg1 : i32
    %c0_i32 = arith.constant 0 : i32
    %2 = arith.minsi %1, %c0_i32 : i32
    %c0_i32_0 = arith.constant 0 : i32
    %c0_i32_1 = arith.constant 0 : i32
    return %2, %c0_i32_0 : i32, i32
  }
  func.func @transform_2(%arg0: i32, %arg1: i32) -> (i32, i32) {
    %c0_i32 = arith.constant 0 : i32
    %c0_i32_0 = arith.constant 0 : i32
    return %arg0, %c0_i32 : i32, i32
  }
}

</mosaic_0001>

<llo_original>
// kernel: tpu_custom_call.1
$region0: #{tpu_custom_call.1}
  #allocation0 [shape = 'u32[]', space=smem, size = 0x4, offset = 0x4, fixed_abs, tag = 'smem constant byte address 0x4 - core index']
  #allocation1 [shape = 'u32[144,128]{1,0:T(1,128)}', space=vmem, size = 0x12000, scoped, tag = 'internal scratch']
  #allocation2 [shape = 'f32[2,8,128]{2,1,0:T(8,128)}', space=vmem, size = 0x2000, scoped, tag = 'scratch operand']
  %s0 = inlined_call_operand.hbm [shape: f32[16,128], index: 0, kind: input, shape index: {}]
  %s1 = inlined_call_operand.hbm [shape: f32[16,128], index: 1, kind: input, shape index: {}]
  %s2 = inlined_call_operand.hbm [shape: f32[8,128], index: 2, kind: output, shape index: {}]
  %s3 = sld [smem:[#allocation0]]
  $region42: #{tpu_custom_call.1} parent=0
    _
  %s5 = ssub.s32 1, %s3
  %s6 = scalar_select 0, %s5, %s3
  $region1: #{tpu_custom_call.1} parent=0
    #allocation3 [shape = 'u8[8192]{0}', space=vmem, size = 0x2000, scoped, tag = 'input window, operand 0, single buffered']
    #allocation4 [shape = 's32[1]{0}', space=sflag, size = 0x4, scoped, tag = 'scoped memory for tpu_custom_call.1']
    #allocation5 [shape = 's32[1]{0}', space=sflag, size = 0x4, scoped, tag = 'scoped memory for tpu_custom_call.1']
    #allocation6 [shape = 'u8[8192]{0}', space=vmem, size = 0x2000, scoped, tag = 'input window, operand 1, single buffered']
    #allocation7 [shape = 's32[1]{0}', space=sflag, size = 0x4, scoped, tag = 'scoped memory for tpu_custom_call.1']
    #allocation8 [shape = 'u8[4096]{0}', space=vmem, size = 0x1000, scoped, tag = 'output window, operand 0, single buffered']
    %7 = vsyncpa [#allocation4], 0
    %8 = vsyncpa [#allocation7], 0
    %9 = vsyncpa [#allocation5], 0
    // Predicated region
    $region2: #{tpu_custom_call.1} parent=1 // pred_check
      _
    $region3: #{tpu_custom_call.1} parent=1 // pred_check_branch
      %11 = sbr.rel (0) target = $region5
    $region4: #{tpu_custom_call.1} parent=1 // pred_region
      %s12 = sadd.s32 0, 0
      %p13 = scmp.lt.s32.totalorder %s12, 0
      %s14 = scalar_select %p13, %s12, 0
      %s15 = smul.u32 2, %s14
      %s17 = ssub.s32 256, 256
      %18 = vsyncadd [#allocation4], %s17
      %s19 = smul.addr %s15, 128
      %s20 = scalar_lea.hbm %s0, %s19
      %s21 = sshll.u32 [#allocation3], 4
      %s22 = int_to_ptr.vmem [resolvable:$true] %s21
      %27 = dma.hbm_to_vmem [thread:$0]  %s20, 256, %s22, [#allocation4], 128, 128, 8
    $region5: #{tpu_custom_call.1} parent=1 // pred_fallthru
      _
    // Predicated region
    $region6: #{tpu_custom_call.1} parent=1 // pred_check
      _
    $region7: #{tpu_custom_call.1} parent=1 // pred_check_branch
      %29 = sbr.rel (0) target = $region9
    $region8: #{tpu_custom_call.1} parent=1 // pred_region
      %s30 = sadd.s32 0, 0
      %p31 = scmp.lt.s32.totalorder %s30, 0
      %s32 = scalar_select %p31, %s30, 0
      %s33 = smul.u32 2, %s32
      %s35 = ssub.s32 256, 256
      %36 = vsyncadd [#allocation7], %s35
      %s37 = smul.addr %s33, 128
      %s38 = scalar_lea.hbm %s1, %s37
      %s39 = sshll.u32 [#allocation6], 4
      %s40 = int_to_ptr.vmem [resolvable:$true] %s39
      %45 = dma.hbm_to_vmem [thread:$0]  %s38, 256, %s40, [#allocation7], 128, 128, 8
    $region9: #{tpu_custom_call.1} parent=1 // pred_fallthru
      _
    // Predicated region
    $region10: #{tpu_custom_call.1} parent=1 // pred_check
      _
    $region11: #{tpu_custom_call.1} parent=1 // pred_check_branch
      %47 = sbr.rel (0) target = $region13
    $region12: #{tpu_custom_call.1} parent=1 // pred_region
      %48 = dma.done [#allocation4], 256
    $region13: #{tpu_custom_call.1} parent=1 // pred_fallthru
      _
    // Predicated region
    $region14: #{tpu_custom_call.1} parent=1 // pred_check
      _
    $region15: #{tpu_custom_call.1} parent=1 // pred_check_branch
      %50 = sbr.rel (0) target = $region17
    $region16: #{tpu_custom_call.1} parent=1 // pred_region
      %51 = dma.done [#allocation7], 256
    $region17: #{tpu_custom_call.1} parent=1 // pred_fallthru
      _
    %s52 = sadd.s32 0, 0
    %p53 = scmp.lt.s32.totalorder %s52, 0
    %s54 = scalar_select %p53, %s52, 0
    %s55 = smul.u32 2, %s54
    %s56 = sadd.s32 0, 0
    %p57 = scmp.lt.s32.totalorder %s56, 0
    %s58 = scalar_select %p57, %s56, 0
    %s59 = smul.u32 2, %s58
    %s60 = sadd.s32 0, 0
    %p61 = scmp.eq.s32.totalorder 0, 0
    // Predicated region
    $region18: #{tpu_custom_call.1} parent=1 // pred_check
      %p62 = pneg %p61
    $region19: #{tpu_custom_call.1} parent=1 // pred_check_branch
      %64 = sbr.rel (%p62) target = $region21
    $region20: #{tpu_custom_call.1} parent=1 // pred_region
      %65 = vst [vmem:[#allocation2] sm:$0xff] 0.0
      %66 = vst [vmem:[#allocation2 + $0x8] sm:$0xff] 0.0
    $region21: #{tpu_custom_call.1} parent=1 // pred_fallthru
      _
    %v67 = vld [vmem:[#allocation6] sm:$0xff]
    %v68 = vld [vmem:[#allocation6 + $0x8] sm:$0xff]
    %v69 = vld [vmem:[#allocation3] sm:$0xff]
    %v70 = vld [vmem:[#allocation3 + $0x8] sm:$0xff]
    %v71 = vsub.f32 %v67, %v69
    %v72 = vsub.f32 %v68, %v70
    %v73 = vmul.f32 %v71, %v71
    %v74 = vmul.f32 %v72, %v72
    %p75 = scmp.lt.s32.totalorder %s60, 1
    // Predicated region
    $region22: #{tpu_custom_call.1} parent=1 // pred_check
      %p76 = pneg %p75
    $region23: #{tpu_custom_call.1} parent=1 // pred_check_branch
      %78 = sbr.rel (%p76) target = $region25
    $region24: #{tpu_custom_call.1} parent=1 // pred_region
      %v79 = vld [vmem:[#allocation2] sm:$0xff]
      %v80 = vld [vmem:[#allocation2 + $0x8] sm:$0xff]
      %v81 = vadd.f32 %v73, 0.0
      %v82 = vadd.f32 %v74, 0.0
      %v83 = vadd.f32 %v79, %v81
      %v84 = vadd.f32 %v80, %v82
      %85 = vst [vmem:[#allocation2] sm:$0xff] %v83
      %86 = vst [vmem:[#allocation2 + $0x8] sm:$0xff] %v84
    $region25: #{tpu_custom_call.1} parent=1 // pred_fallthru
      _
    %p87 = scmp.ge.s32.totalorder %s60, 1
    // Predicated region
    $region26: #{tpu_custom_call.1} parent=1 // pred_check
      %p88 = pneg %p87
    $region27: #{tpu_custom_call.1} parent=1 // pred_check_branch
      %90 = sbr.rel (%p88) target = $region29
    $region28: #{tpu_custom_call.1} parent=1 // pred_region
      %s91 = smul.u32 %s60, 16
      %s92 = ssub.s32 16, %s91
      %v93 = vlaneseq
      %v94 = vshrl.u32 %v93, 7
      %v95 = vadd.s32 %v94, 8
      %v96 = vstv %s92
      %vm97 = vcmp.lt.s32.totalorder %v94, %v96
      %vm98 = vcmp.lt.s32.totalorder %v95, %v96
      %v99 = vsel %vm97, 1, 0
      %v100 = vsel %vm98, 1, 0
      %vm101 = vcmp.eq.s32.totalorder %v99, 1
      %vm102 = vcmp.eq.s32.totalorder %v100, 1
      %v103 = vsel %vm101, %v73, 0.0
      %v104 = vsel %vm102, %v74, 0.0
      %v105 = vld [vmem:[#allocation2] sm:$0xff]
      %v106 = vld [vmem:[#allocation2 + $0x8] sm:$0xff]
      %v107 = vadd.f32 %v103, 0.0
      %v108 = vadd.f32 %v104, 0.0
      %v109 = vadd.f32 %v105, %v107
      %v110 = vadd.f32 %v106, %v108
      %111 = vst [vmem:[#allocation2] sm:$0xff] %v109
      %112 = vst [vmem:[#allocation2 + $0x8] sm:$0xff] %v110
    $region29: #{tpu_custom_call.1} parent=1 // pred_fallthru
      _
    // Predicated region
    $region30: #{tpu_custom_call.1} parent=1 // pred_check
      %p113 = pneg %p61
    $region31: #{tpu_custom_call.1} parent=1 // pred_check_branch
      %115 = sbr.rel (%p113) target = $region33
    $region32: #{tpu_custom_call.1} parent=1 // pred_region
      %v116 = vld [vmem:[#allocation2] sm:$0xff]
      %v117 = vld [vmem:[#allocation2 + $0x8] sm:$0xff]
      %v118 = vadd.f32 %v116, %v117
      %119 = vst [vmem:[#allocation8] sm:$0xff] %v118
    $region33: #{tpu_custom_call.1} parent=1 // pred_fallthru
      _
    // Predicated region
    $region34: #{tpu_custom_call.1} parent=1 // pred_check
      _
    $region35: #{tpu_custom_call.1} parent=1 // pred_check_branch
      %121 = sbr.rel (0) target = $region37
    $region36: #{tpu_custom_call.1} parent=1 // pred_region
      %s123 = ssub.s32 128, 128
      %124 = vsyncadd [#allocation5], %s123
      %s126 = sshll.u32 [#allocation8], 4
      %s127 = int_to_ptr.vmem [resolvable:$true] %s126
      %129 = dma.vmem_to_hbm [thread:$0]  %s127, 128, %s2, [#allocation5]
    $region37: #{tpu_custom_call.1} parent=1 // pred_fallthru
      _
    // Predicated region
    $region38: #{tpu_custom_call.1} parent=1 // pred_check
      _
    $region39: #{tpu_custom_call.1} parent=1 // pred_check_branch
      %131 = sbr.rel (0) target = $region41
    $region40: #{tpu_custom_call.1} parent=1 // pred_region
      %132 = dma.done [#allocation5], 128
    $region41: #{tpu_custom_call.1} parent=1 // pred_fallthru
      _
    %133 = vsyncpa [#allocation4], 1
    %134 = vsyncpa [#allocation7], 1
    %135 = vsyncpa [#allocation5], 1

</llo_original>
